<compile_context>
chip_gen: v5e
topology: v5e:2x2
jax: 0.10.0
libtpu: 0.0.40
codegen_flags: <defaults>
</compile_context>

<pallas_src>
import jax
import jax.numpy as jnp
from jax.experimental import pallas as pl
from jax.experimental.pallas import tpu as pltpu


def _choose_lane_fold(n_points, d):
    """Smallest k with N % k == 0 and (k*D) % 128 == 0 (lane-dense folding).

    Fallback: the largest divisor of N keeping k*D <= 1024.  A block whose
    last dim equals the full (folded) array dim is always legal, just not
    128-aligned, so the fallback still compiles.
    """
    for k in range(1, n_points + 1):
        if n_points % k == 0 and (k * d) % 128 == 0:
            return k
    best = 1
    for k in range(1, n_points + 1):
        if n_points % k == 0 and k * d <= 1024:
            best = k
    return best


def _choose_row_tile(nf, max_rows):
    """Largest multiple-of-8 divisor of nf that fits max_rows, preferring an
    even tile count (load balance across v7x's 2 TensorCores)."""
    cands = [d for d in range(8, nf + 1, 8) if nf % d == 0 and d <= max_rows]
    if not cands:
        # No 8-aligned divisor fits; a single full-extent block is always legal.
        # TODO(synk): for huge, awkward Nf this can exceed the VMEM target —
        # pad Nf (one extra partial tile) instead of one big block.
        return nf
    even = [d for d in cands if (nf // d) % 2 == 0]
    return max(even) if even else max(cands)


def _affine_kernel(x_ref, scale_ref, shift_ref, x_out_ref):
    """One grid step: apply the composed per-batch affine map to one x tile.

    x_ref     : (B, Nt, Dk)  lane-folded x tile (k points per row, k*D lanes)
    scale_ref : (B, Dk)      composed scale, tiled k times along the lane axis
    shift_ref : (B, Dk)      composed shift, same layout
    x_out_ref : (B, Nt, Dk)  transformed tile (HBM-aliased with the input)
    """
    x = x_ref[...].astype(jnp.float32)
    s = scale_ref[...].astype(jnp.float32)
    t = shift_ref[...].astype(jnp.float32)
    x_out_ref[...] = (x * s[:, None, :] + t[:, None, :]).astype(x_out_ref.dtype)


class SequentialFlowPallas:
    """Pallas port of SequentialFlow with a synthetic conditional-affine chain."""

    def __init__(self, ws, bs, wt, bt):
        # ws, wt: (L, C, D) ; bs, bt: (L, 1, D)
        self.ws, self.bs, self.wt, self.bt = ws, bs, wt, bt
        self.num_layers = int(ws.shape[0])

    def __call__(self, x, context, logpx=None, reverse=False, inds=None,
                 integration_times=None):
        # TODO(synk): integration_times is unused for the affine stand-in layers.
        B, N, D = x.shape
        L = self.num_layers

        if inds is None:
            inds = list(range(L - 1, -1, -1)) if reverse else list(range(L))
        else:
            inds = [int(i) for i in inds]
        if len(inds) == 0:
            return x if logpx is None else (x, logpx)

        # ---- hoisted conditioning net: one einsum straight into (L, B, 2D) --
        w_cat = jnp.concatenate([self.ws, self.wt], axis=-1)          # (L, C, 2D)
        b_cat = jnp.concatenate([self.bs, self.bt], axis=-1)          # (L, 1, 2D)
        pre = jnp.einsum('bc,lcd->lbd', context.astype(jnp.float32),
                         w_cat.astype(jnp.float32)) + b_cat           # (L, B, 2D)
        s_all = jnp.tanh(pre[..., :D])                                 # (L, B, D)
        t_all = pre[..., D:]                                           # (L, B, D)

        # ---- compose the visited chain into ONE affine map per batch row ----
        # (static Python loop over tiny (B, D) arrays; exp() precomputed here)
        scale = jnp.ones((B, D), jnp.float32)
        shift = jnp.zeros((B, D), jnp.float32)
        s_sum = jnp.zeros((B, 1), jnp.float32)
        for i in inds:                       # static index -> slice, no gather
            s_i = s_all[i]
            t_i = t_all[i]
            if reverse:                      # x <- (x - t) * exp(-s)
                a_i = jnp.exp(-s_i)
                b_i = -t_i * a_i
            else:                            # x <- x * exp(s) + t
                a_i = jnp.exp(s_i)
                b_i = t_i
            scale = a_i * scale
            shift = a_i * shift + b_i
            s_sum = s_sum + jnp.sum(s_i, axis=-1, keepdims=True)

        # ---- logpx entirely in the wrapper (tiny (B,1) reduction) -----------
        logpx_out = None
        if logpx is not None:
            sign = 1.0 if reverse else -1.0
            logpx_out = logpx.astype(jnp.float32) + sign * float(N) * s_sum

        # ---- lane folding: (B, N, D) -> (B, N/k, k*D), free reshape ---------
        k = _choose_lane_fold(N, D)
        Nf, Dk = N // k, k * D
        x_f = x.reshape(B, Nf, Dk)
        scale_f = jnp.tile(scale, (1, k))                              # (B, Dk)
        shift_f = jnp.tile(shift, (1, k))                              # (B, Dk)

        # ---- VMEM-aware row tiling over the folded point axis ---------------
        itemsize = x.dtype.itemsize
        try:
            vmem_cap = int(pltpu.get_tpu_info().vmem_capacity_bytes)
        except Exception:  # pragma: no cover - conservative fallback
            vmem_cap = 64 * 1024 * 1024
        # target ~8 MiB x tiles on v5e/v6e (128 MiB VMEM), ~4 MiB on v7x (64 MiB);
        # the x tile is resident ~4x (2 in + 2 out pipeline buffers).
        tile_target = min(8 << 20, vmem_cap // 16)
        row_bytes = max(1, B * Dk * itemsize)
        max_rows = max(1, tile_target // row_bytes)
        Nt = _choose_row_tile(Nf, max_rows)
        n_tiles = Nf // Nt

        tile_bytes = B * Nt * Dk * itemsize
        st_bytes = 2 * B * Dk * 4
        footprint = 4 * tile_bytes + 2 * st_bytes + (4 << 20)          # + slack
        vmem_limit = int(min(max(footprint, 16 << 20), (vmem_cap * 3) // 4))

        x_out_f = pl.pallas_call(
            _affine_kernel,
            out_shape=jax.ShapeDtypeStruct((B, Nf, Dk), x_f.dtype),
            grid=(n_tiles,),
            in_specs=[
                pl.BlockSpec((B, Nt, Dk), lambda n: (0, n, 0)),   # x tile
                pl.BlockSpec((B, Dk), lambda n: (0, 0)),          # composed scale
                pl.BlockSpec((B, Dk), lambda n: (0, 0)),          # composed shift
            ],
            out_specs=pl.BlockSpec((B, Nt, Dk), lambda n: (0, n, 0)),
            input_output_aliases={0: 0},                          # x -> x_out
            compiler_params=pltpu.CompilerParams(
                dimension_semantics=("parallel",),
                vmem_limit_bytes=vmem_limit),
        )(x_f, scale_f, shift_f)

        x_out = x_out_f.reshape(B, N, D)
        if logpx is None:
            return x_out
        return x_out, logpx_out.astype(logpx.dtype)


def ref_sequential_flow(x, context, logpx, ws, bs, wt, bt, reverse):
    """Pure-JAX reference mirroring the PyTorch container semantics."""
    L = ws.shape[0]
    N = x.shape[1]
    inds = range(L - 1, -1, -1) if reverse else range(L)
    for i in inds:
        s = jnp.tanh(context @ ws[i] + bs[i, 0])
        t = context @ wt[i] + bt[i, 0]
        if not reverse:
            x = x * jnp.exp(s)[:, None, :] + t[:, None, :]
            logpx = logpx - N * jnp.sum(s, -1, keepdims=True)
        else:
            x = (x - t[:, None, :]) * jnp.exp(-s)[:, None, :]
            logpx = logpx + N * jnp.sum(s, -1, keepdims=True)
    return x, logpx


if __name__ == "__main__":
    B, N, D, C, L = 2, 128, 32, 32, 4

    key = jax.random.PRNGKey(0)
    k = jax.random.split(key, 6)
    x = jax.random.normal(k[0], (B, N, D), jnp.float32)
    context = jax.random.normal(k[1], (B, C), jnp.float32)
    ws = 0.1 * jax.random.normal(k[2], (L, C, D), jnp.float32)
    bs = 0.1 * jax.random.normal(k[3], (L, 1, D), jnp.float32)
    wt = 0.1 * jax.random.normal(k[4], (L, C, D), jnp.float32)
    bt = 0.1 * jax.random.normal(k[5], (L, 1, D), jnp.float32)

    flow = SequentialFlowPallas(ws, bs, wt, bt)
    logpx0 = jnp.zeros((B, 1), jnp.float32)

    # forward with logpx (N=128, D=32 -> lane fold k=4, 32 folded rows,
    # 2 parallel 16-row tiles -> even tile count for v7x's 2 TensorCores)
    x_out, lp_out = flow(x, context, logpx=logpx0, reverse=False)
    jax.block_until_ready((x_out, lp_out))
    x_r, lp_r = ref_sequential_flow(x, context, logpx0, ws, bs, wt, bt, False)
    assert jnp.allclose(x_out, x_r, atol=1e-4, rtol=1e-4), "x mismatch (forward)"
    assert jnp.allclose(lp_out, lp_r, atol=5e-2, rtol=1e-4), "logpx mismatch"

    # reverse direction round-trips back to the input
    x_rt, lp_rt = flow(x_out, context, logpx=lp_out, reverse=True)
    jax.block_until_ready((x_rt, lp_rt))
    assert jnp.allclose(x_rt, x, atol=1e-3, rtol=1e-3), "round-trip mismatch"
    assert jnp.allclose(lp_rt, logpx0, atol=1e-2), "logpx round-trip mismatch"

    # explicit inds + logpx=None path returns only x
    x_only = flow(x, context, logpx=None, reverse=False, inds=[0, 1, 2, 3])
    jax.block_until_ready(x_only)
    assert jnp.allclose(x_only, x_r, atol=1e-4, rtol=1e-4), "logpx=None mismatch"

    # bf16 x I/O path (halves HBM traffic on v6e/v7x); f32 compute in-kernel.
    # NOTE: bf16 output rounding needs looser tolerances than the f32 path.
    x_bf = x.astype(jnp.bfloat16)
    xb_out, lpb_out = flow(x_bf, context, logpx=logpx0, reverse=False)
    jax.block_until_ready((xb_out, lpb_out))
    xb_ref, _ = ref_sequential_flow(x_bf.astype(jnp.float32), context, logpx0,
                                    ws, bs, wt, bt, False)
    assert xb_out.dtype == jnp.bfloat16
    assert jnp.allclose(xb_out.astype(jnp.float32), xb_ref,
                        atol=5e-2, rtol=5e-2), "bf16 path mismatch"

    print("KERNEL_OK")
</pallas_src>

<mosaic_0001>
module attributes {stable_mosaic.version = 11 : i64} {
  func.func @_affine_kernel(%arg0: i32, %arg1: memref<2x16x128xf32, #tpu.memory_space<vmem>>, %arg2: memref<2x128xf32, #tpu.memory_space<vmem>>, %arg3: memref<2x128xf32, #tpu.memory_space<vmem>>, %arg4: memref<2x16x128xf32, #tpu.memory_space<vmem>>) attributes {dimension_semantics = [#tpu.dimension_semantics<parallel>], iteration_bounds = array<i64: 2>, scalar_prefetch = 0 : i64, scratch_operands = 0 : i64, tpu.core_type = #tpu.core_type<tc>, window_params = [{transform_indices = @transform_0, window_bounds = array<i64: 2, 16, 128>}, {pipeline_mode = #tpu.pipeline_mode<synchronous>, transform_indices = @transform_1, window_bounds = array<i64: 2, 128>}, {pipeline_mode = #tpu.pipeline_mode<synchronous>, transform_indices = @transform_2, window_bounds = array<i64: 2, 128>}, {transform_indices = @transform_3, window_bounds = array<i64: 2, 16, 128>}]} {
    %c0 = arith.constant 0 : index
    %c0_0 = arith.constant 0 : index
    %c0_1 = arith.constant 0 : index
    %0 = vector.load %arg1[%c0, %c0_0, %c0_1] : memref<2x16x128xf32, #tpu.memory_space<vmem>>, vector<2x16x128xf32>
    %c0_2 = arith.constant 0 : index
    %c0_3 = arith.constant 0 : index
    %1 = vector.load %arg2[%c0_2, %c0_3] : memref<2x128xf32, #tpu.memory_space<vmem>>, vector<2x128xf32>
    %c0_4 = arith.constant 0 : index
    %c0_5 = arith.constant 0 : index
    %2 = vector.load %arg3[%c0_4, %c0_5] : memref<2x128xf32, #tpu.memory_space<vmem>>, vector<2x128xf32>
    %3 = vector.shape_cast %1 : vector<2x128xf32> to vector<2x1x128xf32>
    %4 = vector.broadcast %3 : vector<2x1x128xf32> to vector<2x16x128xf32>
    %5 = arith.mulf %0, %4 : vector<2x16x128xf32>
    %6 = vector.shape_cast %2 : vector<2x128xf32> to vector<2x1x128xf32>
    %7 = vector.broadcast %6 : vector<2x1x128xf32> to vector<2x16x128xf32>
    %8 = arith.addf %5, %7 : vector<2x16x128xf32>
    %c0_6 = arith.constant 0 : index
    %c0_7 = arith.constant 0 : index
    %c0_8 = arith.constant 0 : index
    %9 = vector.load %arg4[%c0_6, %c0_7, %c0_8] : memref<2x16x128xf32, #tpu.memory_space<vmem>>, vector<2x16x128xf32>
    tpu.vector_store %arg4[%c0_6, %c0_7, %c0_8], %8 {strides = array<i32>} : memref<2x16x128xf32, #tpu.memory_space<vmem>>, vector<2x16x128xf32>,
    return
  }
  func.func @transform_0(%arg0: i32) -> (i32, i32, i32) {
    %c0_i32 = arith.constant 0 : i32
    %c0_i32_0 = arith.constant 0 : i32
    %c0_i32_1 = arith.constant 0 : i32
    return %c0_i32, %arg0, %c0_i32_0 : i32, i32, i32
  }
  func.func @transform_1(%arg0: i32) -> (i32, i32) {
    %c0_i32 = arith.constant 0 : i32
    %c0_i32_0 = arith.constant 0 : i32
    %c0_i32_1 = arith.constant 0 : i32
    return %c0_i32, %c0_i32_0 : i32, i32
  }
  func.func @transform_2(%arg0: i32) -> (i32, i32) {
    %c0_i32 = arith.constant 0 : i32
    %c0_i32_0 = arith.constant 0 : i32
    %c0_i32_1 = arith.constant 0 : i32
    return %c0_i32, %c0_i32_0 : i32, i32
  }
  func.func @transform_3(%arg0: i32) -> (i32, i32, i32) {
    %c0_i32 = arith.constant 0 : i32
    %c0_i32_0 = arith.constant 0 : i32
    %c0_i32_1 = arith.constant 0 : i32
    return %c0_i32, %arg0, %c0_i32_0 : i32, i32, i32
  }
}

</mosaic_0001>

<llo_original>
// kernel: tpu_custom_call.1
$region0: #{tpu_custom_call.1}
  #allocation0 [shape = 'u32[]', space=smem, size = 0x4, offset = 0x4, fixed_abs, tag = 'smem constant byte address 0x4 - core index']
  #allocation1 [shape = 'u32[72,128]{1,0:T(1,128)}', space=vmem, size = 0x9000, scoped, tag = 'internal scratch']
  #allocation6 [shape = 's32[]', space=sflag, size = 0x4, offset = 0, fixed_abs, tag = 'sflag constant byte address 0x0 - dummy sync flag']
  #allocation8 [shape = 's32[]', space=sflag, size = 0x4, offset = 0, fixed_abs, tag = 'sflag constant byte address 0x0 - dummy sync flag']
  %s0 = inlined_call_operand.hbm [shape: f32[2,32,128], index: 0, kind: input, shape index: {}, may-alias: {0,3}]
  %s1 = inlined_call_operand.vmem [shape: f32[2,128], index: 1, kind: input, shape index: {}]
  %s2 = inlined_call_operand.vmem [shape: f32[2,128], index: 2, kind: input, shape index: {}]
  %s3 = inlined_call_operand.hbm [shape: f32[2,32,128], index: 3, kind: output, shape index: {}, may-alias: {0,3}]
  %s4 = sld [smem:[#allocation0]]
  $region49: #{tpu_custom_call.1} parent=0
    _
  %s6 = ssub.s32 1, %s4
  %s7 = scalar_select 0, %s6, %s4
  $region1: #{tpu_custom_call.1} parent=0
    #allocation2 [shape = 'u8[32768]{0}', space=vmem, size = 0x8000, scoped, tag = 'input window, operand 0']
    #allocation3 [shape = 's32[2]{0}', space=sflag, size = 0x8, scoped, tag = 'scoped memory for tpu_custom_call.1']
    #allocation4 [shape = 's32[2]{0}', space=sflag, size = 0x8, scoped, tag = 'scoped memory for tpu_custom_call.1']
    #allocation5 [shape = 'u8[32768]{0}', space=vmem, size = 0x8000, scoped, tag = 'output window, operand 0']
    %8 = vsyncpa [#allocation3], 0
    %s9 = scalar_lea.sflag [#allocation3], 1
    %10 = vsyncpa %s9, 0
    %11 = vsyncpa [#allocation4], 0
    %s12 = scalar_lea.sflag [#allocation4], 1
    %13 = vsyncpa %s12, 0
    loop: start=0, step=1, limit=4
    $region2: #{tpu_custom_call.1} parent=1 // loop_pre_header
      _
    $region3: #{tpu_custom_call.1} parent=1 // loop_header
      %s15 = sphi 0, %s19
      %p16 = scmp.ge.s32.totalorder %s15, 4
      %s25 = sphi 0, %s27
      %s28 = sphi 0, %s25
      %s29 = sphi 0, %s28
      %s45 = sphi 0, %s29
      %s49 = sphi 0, %s49
      %s51 = sphi 0, %s49
      %s52 = sphi 0, %s51
      %s66 = sphi 0, %s52
      %s70 = sphi 0, %s70
      %s72 = sphi 0, %s70
      %s73 = sphi 0, %s72
      %s87 = sphi 0, %s73
      %s93 = sphi 0, %s95
      %s96 = sphi 0, %s93
      %s97 = sphi 0, %s96
      %s113 = sphi 0, %s97
    $region4: #{tpu_custom_call.1} parent=1 // loop_header_branch
      %18 = sbr.rel (%p16) target = $region8
    $region5: #{tpu_custom_call.1} parent=1 // loop_body
      %s20 = ssub.s32 %s15, 1
      %s21 = ssub.s32 %s15, 2
      %s22 = sadd.s32 %s15, 1
      %s23 = ssub.s32 %s15, %s22
      %p24 = scmp.eq.s32.totalorder %s23, 0
      %s26 = sadd.s32 %s25, 1
      %s27 = scalar_select %p24, %s25, %s26
      %p30 = pneg %p24
      %p31 = scmp.eq.s32.totalorder %s15, 1
      %p32 = por %p30, %p31
      %p33 = scmp.ne.s32.totalorder %s25, %s28
      %p34 = scmp.eq.s32.totalorder %s15, 0
      %p35 = por %p33, %p34
      %p36 = scmp.ne.s32.totalorder %s25, %s28
      %p37 = scmp.eq.s32.totalorder %s20, 1
      %p38 = por %p36, %p37
      %p39 = scmp.ne.s32.totalorder %s28, %s29
      %p40 = scmp.eq.s32.totalorder %s20, 0
      %p41 = por %p39, %p40
      %p42 = scmp.ne.s32.totalorder %s28, %s29
      %p43 = scmp.eq.s32.totalorder %s21, 1
      %p44 = por %p42, %p43
      %p46 = scmp.ne.s32.totalorder %s29, %s45
      %p47 = scmp.eq.s32.totalorder %s21, 0
      %p48 = por %p46, %p47
      %s50 = sadd.s32 %s49, 1
      %p53 = scmp.eq.s32.totalorder %s15, 1
      %p54 = scmp.ne.s32.totalorder %s49, %s51
      %p55 = scmp.eq.s32.totalorder %s15, 0
      %p56 = por %p54, %p55
      %p57 = scmp.ne.s32.totalorder %s49, %s51
      %p58 = scmp.eq.s32.totalorder %s20, 1
      %p59 = por %p57, %p58
      %p60 = scmp.ne.s32.totalorder %s51, %s52
      %p61 = scmp.eq.s32.totalorder %s20, 0
      %p62 = por %p60, %p61
      %p63 = scmp.ne.s32.totalorder %s51, %s52
      %p64 = scmp.eq.s32.totalorder %s21, 1
      %p65 = por %p63, %p64
      %p67 = scmp.ne.s32.totalorder %s52, %s66
      %p68 = scmp.eq.s32.totalorder %s21, 0
      %p69 = por %p67, %p68
      %s71 = sadd.s32 %s70, 1
      %p74 = scmp.eq.s32.totalorder %s15, 1
      %p75 = scmp.ne.s32.totalorder %s70, %s72
      %p76 = scmp.eq.s32.totalorder %s15, 0
      %p77 = por %p75, %p76
      %p78 = scmp.ne.s32.totalorder %s70, %s72
      %p79 = scmp.eq.s32.totalorder %s20, 1
      %p80 = por %p78, %p79
      %p81 = scmp.ne.s32.totalorder %s72, %s73
      %p82 = scmp.eq.s32.totalorder %s20, 0
      %p83 = por %p81, %p82
      %p84 = scmp.ne.s32.totalorder %s72, %s73
      %p85 = scmp.eq.s32.totalorder %s21, 1
      %p86 = por %p84, %p85
      %p88 = scmp.ne.s32.totalorder %s73, %s87
      %p89 = scmp.eq.s32.totalorder %s21, 0
      %p90 = por %p88, %p89
      %s91 = ssub.s32 %s15, %s22
      %p92 = scmp.eq.s32.totalorder %s91, 0
      %s94 = sadd.s32 %s93, 1
      %s95 = scalar_select %p92, %s93, %s94
      %p98 = pneg %p92
      %p99 = scmp.eq.s32.totalorder %s15, 1
      %p100 = por %p98, %p99
      %p101 = scmp.ne.s32.totalorder %s93, %s96
      %p102 = scmp.eq.s32.totalorder %s15, 0
      %p103 = por %p101, %p102
      %p104 = scmp.ne.s32.totalorder %s93, %s96
      %p105 = scmp.eq.s32.totalorder %s20, 1
      %p106 = por %p104, %p105
      %p107 = scmp.ne.s32.totalorder %s96, %s97
      %p108 = scmp.eq.s32.totalorder %s20, 0
      %p109 = por %p107, %p108
      %p110 = scmp.ne.s32.totalorder %s96, %s97
      %p111 = scmp.eq.s32.totalorder %s21, 1
      %p112 = por %p110, %p111
      %p114 = scmp.ne.s32.totalorder %s97, %s113
      %p115 = scmp.eq.s32.totalorder %s21, 0
      %p116 = por %p114, %p115
      %p117 = scmp.le.s32.totalorder 1, %s15
      %p118 = scmp.lt.s32.totalorder %s15, 3
      %p119 = pnand %p117, %p118
      %p120 = pneg %p119
      // Predicated region
      $region9: #{tpu_custom_call.1} parent=5 // pred_check
        _
      $region10: #{tpu_custom_call.1} parent=5 // pred_check_branch
        %122 = sbr.rel (%p119) target = $region12
      $region11: #{tpu_custom_call.1} parent=5 // pred_region
        %s123 = ssub.s32 %s15, 1
        // Predicated region
        $region13: #{tpu_custom_call.1} parent=11 // pred_check
          %p124 = pneg %p62
        $region14: #{tpu_custom_call.1} parent=11 // pred_check_branch
          %126 = sbr.rel (%p124) target = $region16
        $region15: #{tpu_custom_call.1} parent=11 // pred_region
          _
        $region16: #{tpu_custom_call.1} parent=11 // pred_fallthru
          _
        // Predicated region
        $region17: #{tpu_custom_call.1} parent=11 // pred_check
          %p127 = pneg %p83
        $region18: #{tpu_custom_call.1} parent=11 // pred_check_branch
          %129 = sbr.rel (%p127) target = $region20
        $region19: #{tpu_custom_call.1} parent=11 // pred_region
          _
        $region20: #{tpu_custom_call.1} parent=11 // pred_fallthru
          _
      $region12: #{tpu_custom_call.1} parent=5 // pred_fallthru
        _
      %p130 = scmp.lt.s32.totalorder %s15, 2
      // Predicated region
      $region21: #{tpu_custom_call.1} parent=5 // pred_check
        %p131 = pneg %p130
      $region22: #{tpu_custom_call.1} parent=5 // pred_check_branch
        %133 = sbr.rel (%p131) target = $region24
      $region23: #{tpu_custom_call.1} parent=5 // pred_region
        // Predicated region
        $region25: #{tpu_custom_call.1} parent=23 // pred_check
          %p134 = pneg %p35
        $region26: #{tpu_custom_call.1} parent=23 // pred_check_branch
          %136 = sbr.rel (%p134) target = $region28
        $region27: #{tpu_custom_call.1} parent=23 // pred_region
          #allocation7 [shape = 'u32[6]{0}', space=smem, size = 0x18, scoped, tag = 'DMA stride descriptor']
          %s137 = sand.u32 %s25, 1
          %s138 = scalar_lea.sflag [#allocation3], %s137
          %s139 = sand.u32 %s25, 1
          %s140 = smul.addr %s139, 32
          %s141 = scalar_lea.vmem [#allocation2], %s140
          %s142 = smul.u32 2, %s15
          %144 = vsyncadd %s138, 0
          %s145 = smul.addr %s142, 8
          %s146 = scalar_lea.hbm %s0, %s145
          %s148 = sshll.u32 1, 14
          %s149 = sxor.u32 4294967295, %s148
          %s151 = sld [smem:[#allocation0]]
          %s152 = sadd.s32 2, %s151
          %s154 = sshll.u32 7, 26
          %s155 = sxor.u32 4294967295, %s154
          %s156 = sand.u32 0, %s155
          %s157 = sshll.u32 %s152, 26
          %s158 = sor.u32 %s156, %s157
          %s159 = sshll.u32 %s146, 4
          %s160 = int_to_ptr.hbm [resolvable:$true] %s159
          %s161 = sshll.u32 %s141, 4
          %s162 = int_to_ptr.vmem [resolvable:$true] %s161
          %168 = sst [smem:[#allocation7]] 512
          %s169 = scalar_lea.smem [#allocation7], 1
          %170 = sst [smem:[%s169]] 256
          %s171 = scalar_lea.smem [#allocation7], 2
          %172 = sst [smem:[%s171]] 2
          %s173 = scalar_lea.smem [#allocation7], 3
          %174 = sst [smem:[%s173]] 128
          %s175 = scalar_lea.smem [#allocation7], 4
          %176 = sst [smem:[%s175]] 128
          %s177 = scalar_lea.smem [#allocation7], 5
          %178 = sst [smem:[%s177]] 8
          %180 = dma.general %s160, 512, %s162, %s138, [#allocation6], [#allocation7], %s158, 0
        $region28: #{tpu_custom_call.1} parent=23 // pred_fallthru
          _
      $region24: #{tpu_custom_call.1} parent=5 // pred_fallthru
        _
      %p181 = scmp.le.s32.totalorder 1, %s15
      %p182 = scmp.lt.s32.totalorder %s15, 3
      %p183 = pnand %p181, %p182
      %p184 = pneg %p183
      // Predicated region
      $region29: #{tpu_custom_call.1} parent=5 // pred_check
        _
      $region30: #{tpu_custom_call.1} parent=5 // pred_check_branch
        %186 = sbr.rel (%p183) target = $region32
      $region31: #{tpu_custom_call.1} parent=5 // pred_region
        %s187 = ssub.s32 %s15, 1
        %s188 = sand.u32 %s28, 1
        %s189 = scalar_lea.sflag [#allocation3], %s188
        %s190 = sand.u32 %s28, 1
        %s191 = smul.addr %s190, 32
        %s192 = scalar_lea.vmem [#allocation2], %s191
        // Predicated region
        $region33: #{tpu_custom_call.1} parent=31 // pred_check
          %p193 = pneg %p41
        $region34: #{tpu_custom_call.1} parent=31 // pred_check_branch
          %195 = sbr.rel (%p193) target = $region36
        $region35: #{tpu_custom_call.1} parent=31 // pred_region
          %197 = dma.done %s189, 512
        $region36: #{tpu_custom_call.1} parent=31 // pred_fallthru
          _
        %s198 = sand.u32 %s28, 1
        %s199 = scalar_lea.sflag [#allocation3], %s198
        %s200 = sand.u32 %s28, 1
        %s201 = smul.addr %s200, 32
        %s202 = scalar_lea.vmem [#allocation2], %s201
        %p203 = pneg %p41
        %p204 = pneg %p38
        %p205 = pneg %p62
        %p206 = pneg %p59
        %p207 = pneg %p83
        %p208 = pneg %p80
        %p209 = pneg %p109
        %p210 = pneg %p106
        %s211 = sand.u32 %s96, 1
        %s212 = scalar_lea.sflag [#allocation4], %s211
        %s213 = sand.u32 %s96, 1
        %s214 = smul.addr %s213, 32
        %s215 = scalar_lea.vmem [#allocation5], %s214
        %s216 = smul.u32 2, %s20
        %s217 = smul.u32 2, %s20
        %v218 = vld [vmem:[%s192] sm:$0xff]
        %v219 = vld [vmem:[%s192 + $0x8] sm:$0xff]
        %v220 = vld [vmem:[%s192 + $0x10] sm:$0xff]
        %v221 = vld [vmem:[%s192 + $0x18] sm:$0xff]
        %v222 = vld [vmem:[%s1] sm:$0x3]
        %v223 = vld [vmem:[%s2] sm:$0x3]
        %v225 = vrot.slane %v222, 1
        %v226 = vperm.slane %v222, 0
        %v227 = vperm.slane %v225, 0
        %v230 = vmul.f32 %v218, %v226
        %v231 = vmul.f32 %v219, %v226
        %v232 = vmul.f32 %v220, %v227
        %v233 = vmul.f32 %v221, %v227
        %v235 = vrot.slane %v223, 1
        %v236 = vperm.slane %v223, 0
        %v237 = vperm.slane %v235, 0
        %v240 = vadd.f32 %v230, %v236
        %v241 = vadd.f32 %v231, %v236
        %v242 = vadd.f32 %v232, %v237
        %v243 = vadd.f32 %v233, %v237
        %244 = vst [vmem:[%s215] sm:$0xff] %v240
        %245 = vst [vmem:[%s215 + $0x8] sm:$0xff] %v241
        %246 = vst [vmem:[%s215 + $0x10] sm:$0xff] %v242
        %247 = vst [vmem:[%s215 + $0x18] sm:$0xff] %v243
        %s248 = sand.u32 %s96, 1
        %s249 = scalar_lea.sflag [#allocation4], %s248
        %s250 = sand.u32 %s96, 1
        %s251 = smul.addr %s250, 32
        %s252 = scalar_lea.vmem [#allocation5], %s251
        // Predicated region
        $region37: #{tpu_custom_call.1} parent=31 // pred_check
          %p253 = pneg %p106
        $region38: #{tpu_custom_call.1} parent=31 // pred_check_branch
          %255 = sbr.rel (%p253) target = $region40
        $region39: #{tpu_custom_call.1} parent=31 // pred_region
          #allocation9 [shape = 'u32[6]{0}', space=smem, size = 0x18, scoped, tag = 'DMA stride descriptor']
          %s256 = smul.u32 2, %s20
          %258 = vsyncadd %s249, 0
          %s259 = smul.addr %s256, 8
          %s260 = scalar_lea.hbm %s3, %s259
          %s262 = sshll.u32 1, 14
          %s263 = sxor.u32 4294967295, %s262
          %s266 = sshll.u32 7, 18
          %s267 = sxor.u32 4294967295, %s266
          %s268 = sand.u32 0, %s267
          %s270 = sor.u32 %s268, 0
          %s271 = sshll.u32 %s252, 4
          %s272 = int_to_ptr.vmem [resolvable:$true] %s271
          %s273 = sshll.u32 %s260, 4
          %s274 = int_to_ptr.hbm [resolvable:$true] %s273
          %280 = sst [smem:[#allocation9]] 256
          %s281 = scalar_lea.smem [#allocation9], 1
          %282 = sst [smem:[%s281]] 512
          %s283 = scalar_lea.smem [#allocation9], 2
          %284 = sst [smem:[%s283]] 2
          %s285 = scalar_lea.smem [#allocation9], 3
          %286 = sst [smem:[%s285]] 128
          %s287 = scalar_lea.smem [#allocation9], 4
          %288 = sst [smem:[%s287]] 128
          %s289 = scalar_lea.smem [#allocation9], 5
          %290 = sst [smem:[%s289]] 8
          %292 = dma.general %s272, 512, %s274, %s249, [#allocation8], [#allocation9], %s270, 0
        $region40: #{tpu_custom_call.1} parent=31 // pred_fallthru
          _
      $region32: #{tpu_custom_call.1} parent=5 // pred_fallthru
        _
      %p293 = scmp.le.s32.totalorder 2, %s15
      // Predicated region
      $region41: #{tpu_custom_call.1} parent=5 // pred_check
        %p294 = pneg %p293
      $region42: #{tpu_custom_call.1} parent=5 // pred_check_branch
        %296 = sbr.rel (%p294) target = $region44
      $region43: #{tpu_custom_call.1} parent=5 // pred_region
        %s297 = ssub.s32 %s15, 2
        // Predicated region
        $region45: #{tpu_custom_call.1} parent=43 // pred_check
          %p298 = pneg %p112
        $region46: #{tpu_custom_call.1} parent=43 // pred_check_branch
          %300 = sbr.rel (%p298) target = $region48
        $region47: #{tpu_custom_call.1} parent=43 // pred_region
          %s301 = sand.u32 %s97, 1
          %s302 = scalar_lea.sflag [#allocation4], %s301
          %s303 = sand.u32 %s97, 1
          %s304 = smul.addr %s303, 32
          %s305 = scalar_lea.vmem [#allocation5], %s304
          %307 = dma.done %s302, 512
        $region48: #{tpu_custom_call.1} parent=43 // pred_fallthru
          _
      $region44: #{tpu_custom_call.1} parent=5 // pred_fallthru
        _
    $region6: #{tpu_custom_call.1} parent=1 // loop_footer
      %s19 = sadd.s32 1, %s15
    $region7: #{tpu_custom_call.1} parent=1 // loop_footer_branch
      %14 = sbr.rel target = $region3
    $region8: #{tpu_custom_call.1} parent=1 // loop_exit
      _
    %308 = vsyncpa [#allocation3], 1
    %s309 = scalar_lea.sflag [#allocation3], 1
    %310 = vsyncpa %s309, 1
    %311 = vsyncpa [#allocation4], 1
    %s312 = scalar_lea.sflag [#allocation4], 1
    %313 = vsyncpa %s312, 1

</llo_original>
